<compile_context>
chip_gen: v6e
topology: v6e:2x2x1
jax: 0.10.0
libtpu: 0.0.40
codegen_flags: <defaults>
</compile_context>

<pallas_src>
import functools

import jax
import jax.numpy as jnp
from jax import lax
from jax.experimental import pallas as pl
from jax.experimental.pallas import tpu as pltpu


# ---------------------------------------------------------------------------
# Tile / VMEM budgeting helpers
# ---------------------------------------------------------------------------
def _round_up(v, m):
    return (v + m - 1) // m * m


def _vmem_capacity_bytes():
    try:
        return int(pltpu.get_tpu_info().vmem_capacity_bytes)
    except Exception:
        return 64 * 1024 * 1024  # conservative (v7x) fallback


def _pick_row_tile(n, c, itemsize):
    """Largest row tile (multiple of the dtype sublane pack) fitting the budget."""
    sublane = 8 * (4 // itemsize)          # f32 -> 8, bf16 -> 16, int8/fp8 -> 32
    vmem_cap = _vmem_capacity_bytes()
    # Target ~8 MiB per block; with 2x double-buffered input + output blocks
    # (~4x block bytes resident) this stays well under 64 MiB (v7x) and
    # 128 MiB (v5e/v6e).
    block_budget = min(8 * 1024 * 1024, vmem_cap // 8)
    tr = (block_budget // max(1, c * itemsize)) // sublane * sublane
    tr = max(sublane, tr)
    tr = min(tr, _round_up(n, sublane))    # never larger than (padded) n
    return tr


def _pad_rows(x2d, tr):
    """Zero-pad rows so the tile divides the row count (keeps pipelining)."""
    n, _ = x2d.shape
    n_pad = _round_up(n, tr)
    if n_pad != n:
        x2d = jnp.pad(x2d, ((0, n_pad - n), (0, 0)))
    return n_pad, x2d


def _compiler_params(block_bytes, extra_bytes, semantics):
    needed = 4 * block_bytes + extra_bytes + (2 << 20)
    limit = int(min(max(needed, 32 << 20), _vmem_capacity_bytes()))
    return pltpu.CompilerParams(dimension_semantics=semantics,
                                vmem_limit_bytes=limit)


# ---------------------------------------------------------------------------
# Row-wise kernels (reduce over last axis C)
# ---------------------------------------------------------------------------
def _layernorm_kernel(x_ref, g_ref, b_ref, o_ref, *, eps, inv_c):
    x = x_ref[...].astype(jnp.float32)
    s = jnp.sum(x, axis=-1, keepdims=True)
    sq = jnp.sum(x * x, axis=-1, keepdims=True)
    mean = s * inv_c
    var = sq * inv_c - mean * mean           # biased variance
    inv = lax.rsqrt(var + eps)
    y = (x - mean) * inv * g_ref[...] + b_ref[...]
    o_ref[...] = y.astype(o_ref.dtype)


def _scalenorm_kernel(x_ref, s_ref, o_ref, *, eps, inv_c):
    # fairseq (MEGA) ScaleNorm: scalar * x * rsqrt(mean(x^2) + eps)
    x = x_ref[...].astype(jnp.float32)
    ms = jnp.sum(x * x, axis=-1, keepdims=True) * inv_c
    y = s_ref[0, 0] * x * lax.rsqrt(ms + eps)
    o_ref[...] = y.astype(o_ref.dtype)


def _rmsnorm_kernel(x_ref, w_ref, o_ref, *, eps, inv_c):
    x = x_ref[...].astype(jnp.float32)
    ms = jnp.sum(x * x, axis=-1, keepdims=True) * inv_c
    y = x * w_ref[...] * lax.rsqrt(ms + eps)
    o_ref[...] = y.astype(o_ref.dtype)


def _rowwise_call(kernel, x2d, vmem_params=(), smem_params=(), **kw):
    n, c = x2d.shape
    itemsize = jnp.dtype(x2d.dtype).itemsize
    tr = _pick_row_tile(n, c, itemsize)
    n_pad, x_pad = _pad_rows(x2d, tr)
    grid = (n_pad // tr,)

    in_specs = [pl.BlockSpec((tr, c), lambda i: (i, 0))]
    for p in vmem_params:
        in_specs.append(pl.BlockSpec(p.shape, lambda i: (0, 0)))
    for _ in smem_params:
        in_specs.append(pl.BlockSpec(memory_space=pltpu.MemorySpace.SMEM))

    extra = sum(int(p.size) * 4 for p in vmem_params) * 2
    y = pl.pallas_call(
        functools.partial(kernel, **kw),
        out_shape=jax.ShapeDtypeStruct((n_pad, c), x2d.dtype),
        grid=grid,
        in_specs=in_specs,
        out_specs=pl.BlockSpec((tr, c), lambda i: (i, 0)),
        compiler_params=_compiler_params(tr * c * itemsize, extra, ("parallel",)),
    )(x_pad, *vmem_params, *smem_params)
    return y[:n] if n_pad != n else y


def layernorm2d(x2d, gamma, beta, eps):
    c = x2d.shape[1]
    return _rowwise_call(_layernorm_kernel, x2d,
                         vmem_params=(gamma.reshape(1, c), beta.reshape(1, c)),
                         eps=eps, inv_c=1.0 / c)


def scalenorm2d(x2d, scalar, eps):
    c = x2d.shape[1]
    return _rowwise_call(_scalenorm_kernel, x2d,
                         smem_params=(scalar.reshape(1, 1),),
                         eps=eps, inv_c=1.0 / c)


def rmsnorm2d(x2d, weight, eps):
    c = x2d.shape[1]
    return _rowwise_call(_rmsnorm_kernel, x2d,
                         vmem_params=(weight.reshape(1, c),),
                         eps=eps, inv_c=1.0 / c)


# ---------------------------------------------------------------------------
# BatchNorm: tiled two-pass (per-channel stats over all rows, then normalize)
# ---------------------------------------------------------------------------
def _bn_stats_kernel(x_ref, mean_ref, rstd_ref, sum_sc, sq_sc, *, eps, n_rows):
    i = pl.program_id(0)

    @pl.when(i == 0)
    def _():
        sum_sc[...] = jnp.zeros_like(sum_sc)
        sq_sc[...] = jnp.zeros_like(sq_sc)

    x = x_ref[...].astype(jnp.float32)
    sum_sc[...] += jnp.sum(x, axis=0, keepdims=True)
    sq_sc[...] += jnp.sum(x * x, axis=0, keepdims=True)

    @pl.when(i == pl.num_programs(0) - 1)
    def _():
        inv_n = 1.0 / n_rows                      # true row count (padding rows are zero)
        m = sum_sc[...] * inv_n
        var = sq_sc[...] * inv_n - m * m          # biased variance (training-mode BN)
        mean_ref[...] = m
        rstd_ref[...] = lax.rsqrt(var + eps)


def _bn_norm_kernel(x_ref, mean_ref, rstd_ref, w_ref, b_ref, o_ref):
    x = x_ref[...].astype(jnp.float32)
    y = (x - mean_ref[...]) * rstd_ref[...] * w_ref[...] + b_ref[...]
    o_ref[...] = y.astype(o_ref.dtype)


def batchnorm2d(x2d, weight, bias, eps):
    n, c = x2d.shape
    itemsize = jnp.dtype(x2d.dtype).itemsize
    tr = _pick_row_tile(n, c, itemsize)
    n_pad, x_pad = _pad_rows(x2d, tr)
    grid = (n_pad // tr,)
    block_bytes = tr * c * itemsize

    # Pass 1: per-channel mean / rstd (reduction over row tiles).
    mean, rstd = pl.pallas_call(
        functools.partial(_bn_stats_kernel, eps=eps, n_rows=n),
        out_shape=(jax.ShapeDtypeStruct((1, c), jnp.float32),
                   jax.ShapeDtypeStruct((1, c), jnp.float32)),
        grid=grid,
        in_specs=[pl.BlockSpec((tr, c), lambda i: (i, 0))],
        out_specs=(pl.BlockSpec((1, c), lambda i: (0, 0)),
                   pl.BlockSpec((1, c), lambda i: (0, 0))),
        scratch_shapes=[pltpu.VMEM((1, c), jnp.float32),
                        pltpu.VMEM((1, c), jnp.float32)],
        compiler_params=_compiler_params(block_bytes, 8 * c * 4, ("arbitrary",)),
    )(x_pad)

    # Pass 2: normalize, fully parallel over row tiles.
    y = pl.pallas_call(
        _bn_norm_kernel,
        out_shape=jax.ShapeDtypeStruct((n_pad, c), x2d.dtype),
        grid=grid,
        in_specs=[pl.BlockSpec((tr, c), lambda i: (i, 0)),
                  pl.BlockSpec((1, c), lambda i: (0, 0)),
                  pl.BlockSpec((1, c), lambda i: (0, 0)),
                  pl.BlockSpec((1, c), lambda i: (0, 0)),
                  pl.BlockSpec((1, c), lambda i: (0, 0))],
        out_specs=pl.BlockSpec((tr, c), lambda i: (i, 0)),
        compiler_params=_compiler_params(block_bytes, 16 * c * 4, ("parallel",)),
    )(x_pad, mean, rstd, weight.reshape(1, c), bias.reshape(1, c))
    return y[:n] if n_pad != n else y


# ---------------------------------------------------------------------------
# SequenceNorm wrapper (mirrors the PyTorch module's dispatch)
# ---------------------------------------------------------------------------
class SequenceNorm:
    def __init__(self, norm_type, embedding_dim, eps=1e-5, affine=True):
        self.norm_type = norm_type
        self.affine = affine
        c = embedding_dim
        # Parameter init matches the PyTorch defaults (ones / zeros); when
        # affine=False we pass identity parameters (mathematically equivalent).
        if norm_type == 'layernorm':
            self.eps = 1e-5                      # fairseq LayerNorm default
            self.gamma = jnp.ones((c,), jnp.float32)
            self.beta = jnp.zeros((c,), jnp.float32)
        elif norm_type == 'scalenorm':
            self.eps = eps                       # SequenceNorm forwards eps
            self.scalar = jnp.ones((1,), jnp.float32)
        elif norm_type == 'rmsnorm':
            self.eps = 1e-6                      # fairseq RMSNorm default
            self.weight = jnp.ones((c,), jnp.float32)
        elif norm_type in ('batchnorm', 'syncbatchnorm'):
            self.eps = 1e-5                      # nn.BatchNorm1d default
            self.weight = jnp.ones((c,), jnp.float32)
            self.bias = jnp.zeros((c,), jnp.float32)
            # TODO(synk): running-stats tracking / momentum update and
            # SyncBatchNorm cross-device sync are stateful training
            # bookkeeping and are not reproduced; forward uses batch stats.
        else:
            raise ValueError('Unknown norm type: {}'.format(norm_type))

    def __call__(self, x):
        assert x.ndim == 3  # (T, B, C)
        t, b, c = x.shape
        x2d = x.reshape(t * b, c)
        if self.norm_type == 'layernorm':
            y = layernorm2d(x2d, self.gamma, self.beta, self.eps)
        elif self.norm_type == 'scalenorm':
            y = scalenorm2d(x2d, self.scalar, self.eps)
        elif self.norm_type == 'rmsnorm':
            y = rmsnorm2d(x2d, self.weight, self.eps)
        else:  # batchnorm / syncbatchnorm
            y = batchnorm2d(x2d, self.weight, self.bias, self.eps)
        return y.reshape(t, b, c)


# ---------------------------------------------------------------------------
# Plain-JAX references for verification
# ---------------------------------------------------------------------------
def _ref(norm_type, x, eps):
    x = x.astype(jnp.float32)
    if norm_type == 'layernorm':
        m = jnp.mean(x, -1, keepdims=True)
        v = jnp.mean((x - m) ** 2, -1, keepdims=True)
        return (x - m) * lax.rsqrt(v + eps)
    if norm_type in ('scalenorm', 'rmsnorm'):
        ms = jnp.mean(x * x, -1, keepdims=True)
        return x * lax.rsqrt(ms + eps)
    # batchnorm: per-channel over (T, B), biased variance
    m = jnp.mean(x, axis=(0, 1), keepdims=True)
    v = jnp.mean((x - m) ** 2, axis=(0, 1), keepdims=True)
    return (x - m) * lax.rsqrt(v + eps)


if __name__ == "__main__":
    key = jax.random.PRNGKey(0)
    eps_map = {'layernorm': 1e-5, 'scalenorm': 1e-5, 'rmsnorm': 1e-6,
               'batchnorm': 1e-5}
    # (8, 2, 32): tile-aligned path; (9, 3, 32): exercises the row-padding path.
    for shape in ((8, 2, 32), (9, 3, 32)):
        key, sub = jax.random.split(key)
        x = jax.random.normal(sub, shape, dtype=jnp.float32)
        for norm_type in ('layernorm', 'scalenorm', 'rmsnorm', 'batchnorm'):
            mod = SequenceNorm(norm_type, shape[-1])
            y = jax.block_until_ready(mod(x))
            ref = _ref(norm_type, x, eps_map[norm_type])
            assert y.shape == x.shape and y.dtype == x.dtype, (norm_type, shape)
            assert jnp.allclose(y, ref, atol=1e-4, rtol=1e-4), (norm_type, shape)
    print("KERNEL_OK")
</pallas_src>

<mosaic_0001>
module attributes {stable_mosaic.version = 11 : i64} {
  func.func @_layernorm_kernel(%arg0: i32, %arg1: memref<16x32xf32, #tpu.memory_space<vmem>>, %arg2: memref<1x32xf32, #tpu.memory_space<vmem>>, %arg3: memref<1x32xf32, #tpu.memory_space<vmem>>, %arg4: memref<16x32xf32, #tpu.memory_space<vmem>>) attributes {dimension_semantics = [#tpu.dimension_semantics<parallel>], iteration_bounds = array<i64: 1>, scalar_prefetch = 0 : i64, scratch_operands = 0 : i64, tpu.core_type = #tpu.core_type<tc>, window_params = [{transform_indices = @transform_0, window_bounds = array<i64: 16, 32>}, {pipeline_mode = #tpu.pipeline_mode<synchronous>, transform_indices = @transform_1, window_bounds = array<i64: 1, 32>}, {pipeline_mode = #tpu.pipeline_mode<synchronous>, transform_indices = @transform_2, window_bounds = array<i64: 1, 32>}, {transform_indices = @transform_3, window_bounds = array<i64: 16, 32>}]} {
    %c0 = arith.constant 0 : index
    %c0_0 = arith.constant 0 : index
    %0 = vector.load %arg1[%c0, %c0_0] : memref<16x32xf32, #tpu.memory_space<vmem>>, vector<16x32xf32>
    %cst = arith.constant dense<0.000000e+00> : vector<16xf32>
    %1 = vector.multi_reduction <add>, %0, %cst [1] : vector<16x32xf32> to vector<16xf32>
    %2 = vector.shape_cast %1 : vector<16xf32> to vector<16x1xf32>
    %3 = arith.mulf %0, %0 : vector<16x32xf32>
    %cst_1 = arith.constant dense<0.000000e+00> : vector<16xf32>
    %4 = vector.multi_reduction <add>, %3, %cst_1 [1] : vector<16x32xf32> to vector<16xf32>
    %5 = vector.shape_cast %4 : vector<16xf32> to vector<16x1xf32>
    %cst_2 = arith.constant 3.125000e-02 : f32
    %6 = vector.broadcast %cst_2 : f32 to vector<16x1xf32>
    %7 = arith.mulf %2, %6 : vector<16x1xf32>
    %cst_3 = arith.constant 3.125000e-02 : f32
    %8 = vector.broadcast %cst_3 : f32 to vector<16x1xf32>
    %9 = arith.mulf %5, %8 : vector<16x1xf32>
    %10 = arith.mulf %7, %7 : vector<16x1xf32>
    %11 = arith.subf %9, %10 : vector<16x1xf32>
    %cst_4 = arith.constant 9.99999974E-6 : f32
    %12 = vector.broadcast %cst_4 : f32 to vector<16x1xf32>
    %13 = arith.addf %11, %12 : vector<16x1xf32>
    %14 = math.rsqrt %13 : vector<16x1xf32>
    %15 = vector.broadcast %7 : vector<16x1xf32> to vector<16x32xf32>
    %16 = arith.subf %0, %15 : vector<16x32xf32>
    %17 = vector.broadcast %14 : vector<16x1xf32> to vector<16x32xf32>
    %18 = arith.mulf %16, %17 : vector<16x32xf32>
    %c0_5 = arith.constant 0 : index
    %c0_6 = arith.constant 0 : index
    %19 = vector.load %arg2[%c0_5, %c0_6] : memref<1x32xf32, #tpu.memory_space<vmem>>, vector<1x32xf32>
    %20 = vector.broadcast %19 : vector<1x32xf32> to vector<16x32xf32>
    %21 = arith.mulf %18, %20 : vector<16x32xf32>
    %c0_7 = arith.constant 0 : index
    %c0_8 = arith.constant 0 : index
    %22 = vector.load %arg3[%c0_7, %c0_8] : memref<1x32xf32, #tpu.memory_space<vmem>>, vector<1x32xf32>
    %23 = vector.broadcast %22 : vector<1x32xf32> to vector<16x32xf32>
    %24 = arith.addf %21, %23 : vector<16x32xf32>
    %c0_9 = arith.constant 0 : index
    %c0_10 = arith.constant 0 : index
    %25 = vector.load %arg4[%c0_9, %c0_10] : memref<16x32xf32, #tpu.memory_space<vmem>>, vector<16x32xf32>
    tpu.vector_store %arg4[%c0_9, %c0_10], %24 {strides = array<i32>} : memref<16x32xf32, #tpu.memory_space<vmem>>, vector<16x32xf32>,
    return
  }
  func.func @transform_0(%arg0: i32) -> (i32, i32) {
    %c0_i32 = arith.constant 0 : i32
    %c0_i32_0 = arith.constant 0 : i32
    return %arg0, %c0_i32 : i32, i32
  }
  func.func @transform_1(%arg0: i32) -> (i32, i32) {
    %c0_i32 = arith.constant 0 : i32
    %c0_i32_0 = arith.constant 0 : i32
    %c0_i32_1 = arith.constant 0 : i32
    return %c0_i32, %c0_i32_0 : i32, i32
  }
  func.func @transform_2(%arg0: i32) -> (i32, i32) {
    %c0_i32 = arith.constant 0 : i32
    %c0_i32_0 = arith.constant 0 : i32
    %c0_i32_1 = arith.constant 0 : i32
    return %c0_i32, %c0_i32_0 : i32, i32
  }
  func.func @transform_3(%arg0: i32) -> (i32, i32) {
    %c0_i32 = arith.constant 0 : i32
    %c0_i32_0 = arith.constant 0 : i32
    return %arg0, %c0_i32 : i32, i32
  }
}

</mosaic_0001>

<llo_original>
// kernel: tpu_custom_call.1
$region0: #{tpu_custom_call.1}
  #allocation0 [shape = 'u32[]', space=smem, size = 0x4, offset = 0x4, fixed_abs, tag = 'smem constant byte address 0x4 - core index']
  #allocation1 [shape = 'u32[144,128]{1,0:T(1,128)}', space=vmem, size = 0x12000, scoped, tag = 'internal scratch']
  %s0 = inlined_call_operand.hbm [shape: f32[16,32], index: 0, kind: input, shape index: {}]
  %s1 = inlined_call_operand.vmem [shape: f32[1,32], index: 1, kind: input, shape index: {}]
  %s2 = inlined_call_operand.vmem [shape: f32[1,32], index: 2, kind: input, shape index: {}]
  %s3 = inlined_call_operand.hbm [shape: f32[16,32], index: 3, kind: output, shape index: {}]
  %s4 = sld [smem:[#allocation0]]
  $region26: #{tpu_custom_call.1} parent=0
    _
  %s6 = ssub.s32 1, %s4
  %s7 = scalar_select 0, %s6, %s4
  $region1: #{tpu_custom_call.1} parent=0
    #allocation2 [shape = 'u8[8192]{0}', space=vmem, size = 0x2000, scoped, tag = 'input window, operand 0, single buffered']
    #allocation3 [shape = 's32[1]{0}', space=sflag, size = 0x4, scoped, tag = 'scoped memory for tpu_custom_call.1']
    #allocation4 [shape = 's32[1]{0}', space=sflag, size = 0x4, scoped, tag = 'scoped memory for tpu_custom_call.1']
    #allocation5 [shape = 'u8[8192]{0}', space=vmem, size = 0x2000, scoped, tag = 'output window, operand 0, single buffered']
    %8 = vsyncpa [#allocation3], 0
    %9 = vsyncpa [#allocation4], 0
    // Predicated region
    $region2: #{tpu_custom_call.1} parent=1 // pred_check
      _
    $region3: #{tpu_custom_call.1} parent=1 // pred_check_branch
      %11 = sbr.rel (0) target = $region5
    $region4: #{tpu_custom_call.1} parent=1 // pred_region
      %s13 = ssub.s32 256, 256
      %14 = vsyncadd [#allocation3], %s13
      %s15 = sshll.u32 [#allocation2], 4
      %s16 = int_to_ptr.vmem [resolvable:$true] %s15
      %21 = dma.hbm_to_vmem [thread:$0]  %s0, 256, %s16, [#allocation3], 128, 128, 8
    $region5: #{tpu_custom_call.1} parent=1 // pred_fallthru
      _
    // Predicated region
    $region6: #{tpu_custom_call.1} parent=1 // pred_check
      _
    $region7: #{tpu_custom_call.1} parent=1 // pred_check_branch
      %23 = sbr.rel (0) target = $region9
    $region8: #{tpu_custom_call.1} parent=1 // pred_region
      _
    $region9: #{tpu_custom_call.1} parent=1 // pred_fallthru
      _
    // Predicated region
    $region10: #{tpu_custom_call.1} parent=1 // pred_check
      _
    $region11: #{tpu_custom_call.1} parent=1 // pred_check_branch
      %25 = sbr.rel (0) target = $region13
    $region12: #{tpu_custom_call.1} parent=1 // pred_region
      _
    $region13: #{tpu_custom_call.1} parent=1 // pred_fallthru
      _
    // Predicated region
    $region14: #{tpu_custom_call.1} parent=1 // pred_check
      _
    $region15: #{tpu_custom_call.1} parent=1 // pred_check_branch
      %27 = sbr.rel (0) target = $region17
    $region16: #{tpu_custom_call.1} parent=1 // pred_region
      %28 = dma.done [#allocation3], 256
    $region17: #{tpu_custom_call.1} parent=1 // pred_fallthru
      _
    %v29 = vld [vmem:[#allocation2] sm:$0xff]
    %v30 = vld [vmem:[#allocation2 + $0x8] sm:$0xff]
    %vm31 = vcmask 261120
    %v32 = vsel %vm31, %v29, 0.0
    %33 = vadd.xlane.f32.xlu0 %v32
    %v34 = vpop.xlane.xlu0 %33
    %v35 = vsel %vm31, %v30, 0.0
    %36 = vadd.xlane.f32.xlu0 %v35
    %v37 = vpop.xlane.xlu0 %36
    %v38 = vmul.f32 %v29, %v29
    %v39 = vmul.f32 %v30, %v30
    %v40 = vsel %vm31, %v38, 0.0
    %41 = vadd.xlane.f32.xlu0 %v40
    %v42 = vpop.xlane.xlu0 %41
    %v43 = vsel %vm31, %v39, 0.0
    %44 = vadd.xlane.f32.xlu0 %v43
    %v45 = vpop.xlane.xlu0 %44
    %v46 = vmul.f32 %v34, 0.03125
    %v47 = vmul.f32 %v37, 0.03125
    %v48 = vmul.f32 %v42, 0.03125
    %v49 = vmul.f32 %v45, 0.03125
    %v50 = vmul.f32 %v46, %v46
    %v51 = vmul.f32 %v47, %v47
    %v52 = vsub.f32 %v48, %v50
    %v53 = vsub.f32 %v49, %v51
    %v54 = vadd.f32 %v52, 1e-05
    %v55 = vadd.f32 %v53, 1e-05
    %v56 = vrsqrt.pop %v54
    %v57 = vrsqrt.pop %v55
    %v58 = vsub.f32 %v29, %v46
    %v59 = vsub.f32 %v30, %v47
    %v60 = vmul.f32 %v58, %v56
    %v61 = vmul.f32 %v59, %v57
    %v62 = vld [vmem:[%s1] sm:$0x1]
    %v64 = vlaneseq
    %v65 = vshrl.u32 %v64, 7
    %v66 = vsub.s32 0, %v65
    %v67 = vrot.slane %v62, %v66
    %v69 = vmul.f32 %v60, %v67
    %v70 = vmul.f32 %v61, %v67
    %v71 = vld [vmem:[%s2] sm:$0x1]
    %v73 = vlaneseq
    %v74 = vshrl.u32 %v73, 7
    %v75 = vsub.s32 0, %v74
    %v76 = vrot.slane %v71, %v75
    %v78 = vadd.f32 %v69, %v76
    %v79 = vadd.f32 %v70, %v76
    %80 = vst.msk [vmem:[#allocation5] sm:$0xff] %vm31, %v78
    %81 = vst.msk [vmem:[#allocation5 + $0x8] sm:$0xff] %vm31, %v79
    // Predicated region
    $region18: #{tpu_custom_call.1} parent=1 // pred_check
      _
    $region19: #{tpu_custom_call.1} parent=1 // pred_check_branch
      %83 = sbr.rel (0) target = $region21
    $region20: #{tpu_custom_call.1} parent=1 // pred_region
      %s85 = ssub.s32 256, 256
      %86 = vsyncadd [#allocation4], %s85
      %s87 = sshll.u32 [#allocation5], 4
      %s88 = int_to_ptr.vmem [resolvable:$true] %s87
      %93 = dma.vmem_to_hbm [thread:$0]  %s88, 256, %s3, [#allocation4], 128, 128, 8
    $region21: #{tpu_custom_call.1} parent=1 // pred_fallthru
      _
    // Predicated region
    $region22: #{tpu_custom_call.1} parent=1 // pred_check
      _
    $region23: #{tpu_custom_call.1} parent=1 // pred_check_branch
      %95 = sbr.rel (0) target = $region25
    $region24: #{tpu_custom_call.1} parent=1 // pred_region
      %96 = dma.done [#allocation4], 256
    $region25: #{tpu_custom_call.1} parent=1 // pred_fallthru
      _
    %97 = vsyncpa [#allocation3], 1
    %98 = vsyncpa [#allocation4], 1

</llo_original>
